<compile_context>
chip_gen: v7x
topology: tpu7x:2x2x1
jax: 0.10.0
libtpu: 0.0.40
codegen_flags: <defaults>
</compile_context>

<pallas_src>
import jax
import jax.numpy as jnp
import numpy as np
from jax.experimental import pallas as pl
from jax.experimental.pallas import tpu as pltpu


def _pre_kernel(x_ref, at_ref, w1_ref, pre_ref):
    """Baseline pre-ReLU activation pre = (a_hat @ x) @ w1, from a_hat^T only.

    (a_hat @ x)[n, f] = sum_k a_hat[n, k] x[k, f] = sum_k at[k, n] x[k, f].
    """
    ax = jax.lax.dot_general(
        at_ref[...], x_ref[...],
        dimension_numbers=(((0,), (0,)), ((), ())),
        preferred_element_type=jnp.float32)                       # [N, F]
    pre_ref[...] = jnp.dot(ax, w1_ref[...],
                           preferred_element_type=jnp.float32)    # [N, H]


def _ablate_kernel(x_ref, at_ref, pre_ref, w1_ref, w2t_ref, out_ref,
                   acc_ref, scaled_ref, onehot_ref):
    """Grid = (i over ablated-node tiles ["parallel"],
               j over neighbor tiles     ["arbitrary"]).

    Per (i, j): rank-1 ReLU correction for TM ablated nodes against TJ
    neighbor rows of pre, accumulated into a [TM, H] scratch.  The target
    logit delta and the one-hot scatter into the [TM, F] output happen on the
    last j step.
    """
    j = pl.program_id(1)

    @pl.when(j == 0)
    def _init():
        x = x_ref[...]                                            # [TM, F]
        tm, f = x.shape
        col_f = jax.lax.broadcasted_iota(jnp.int32, (tm, f), 1)
        v = jnp.max(x, axis=1, keepdims=True)                     # [TM,1] = x[i,f_i]
        feat = jnp.min(jnp.where(x == v, col_f, f), axis=1, keepdims=True)
        onehot = (col_f == feat).astype(jnp.float32)              # [TM, F]
        onehot_ref[...] = onehot
        # x[i, f_i] * w1[f_i, :] via one-hot matmul (F is small here).
        scaled_ref[...] = v * jnp.dot(onehot, w1_ref[...],
                                      preferred_element_type=jnp.float32)
        acc_ref[...] = jnp.zeros_like(acc_ref)

    pre = pre_ref[...]                                            # [TJ, H]
    a_blk = at_ref[...]                                           # [TM, TJ] = a_hat[j, i]
    scaled = scaled_ref[...]                                      # [TM, H]
    # Rank-1 perturbation of this neighbor chunk (pure VPU, bounded [TM,TJ,H]).
    pert = pre[None, :, :] - a_blk[:, :, None] * scaled[:, None, :]
    corr = jnp.maximum(pert, 0.0) - jnp.maximum(pre, 0.0)[None, :, :]
    acc_ref[...] += jnp.sum(corr, axis=1)                         # [TM, H]

    @pl.when(j == pl.num_programs(1) - 1)
    def _finalize():
        # (y - y_pert)[0, t] = -(pooled_pert - pooled_base) . w2[:, t] / N
        delta = -jnp.sum(acc_ref[...] * w2t_ref[...], axis=1, keepdims=True)
        out_ref[...] = (onehot_ref[...] * delta).astype(out_ref.dtype)


def graph_feature_ablation(x, a_hat, w1, w2, target, *, tm=None, tj=None):
    """Pallas-backed GraphFeatureAblation: attribution of shape x.shape."""
    n, f = x.shape
    h = w1.shape[1]

    # Glue: a single transposed adjacency (contiguous per-ablated-node rows for
    # the stage-2 row blocks) and the target readout column of w2 with the 1/N
    # mean-pool folded in (removes all [N, C] logits work from the kernel).
    a_hat_t = jnp.transpose(a_hat)
    w2_t = (jnp.take(w2, jnp.asarray(target, jnp.int32), axis=1)
            .reshape(1, h) * jnp.float32(1.0 / n))

    # ---- Stage 1: baseline pre-ReLU activation, computed exactly once. ----
    # TODO(synk): tile this matmul over node rows for very large N; at these
    # sizes the full arrays comfortably fit in VMEM.
    pre = pl.pallas_call(
        _pre_kernel,
        out_shape=jax.ShapeDtypeStruct((n, h), jnp.float32),
        in_specs=[pl.BlockSpec(memory_space=pltpu.MemorySpace.VMEM)] * 3,
        out_specs=pl.BlockSpec(memory_space=pltpu.MemorySpace.VMEM),
    )(x, a_hat_t, w1)

    # ---- Stage 2: per-node ablation on an (i, j) grid. ----
    # Tile constraints: tm (sublane dim of x / a_t / out blocks) must be a
    # multiple of 8 or equal N; tj (lane dim of the a_t block) must be a
    # multiple of 128 or equal N.  TM*TJ*H*4 stays ~2 MiB, well inside the
    # scoped-VMEM budget on every generation (v7x: 64 MiB physical VMEM).
    if tm is None:
        tm = n if n <= 128 else 128
    if tj is None:
        tj = n if n < 128 else 128
    assert n % tm == 0 and n % tj == 0, "demo requires N to be tile-divisible"

    grid = (n // tm, n // tj)

    return pl.pallas_call(
        _ablate_kernel,
        out_shape=jax.ShapeDtypeStruct((n, f), jnp.float32),
        grid_spec=pltpu.PrefetchScalarGridSpec(
            num_scalar_prefetch=0,
            grid=grid,
            in_specs=[
                pl.BlockSpec((tm, f), lambda i, j: (i, 0)),    # ablated-node rows of x
                pl.BlockSpec((tm, tj), lambda i, j: (i, j)),   # a_hat^T block
                pl.BlockSpec((tj, h), lambda i, j: (j, 0)),    # pre rows (neighbor chunk)
                pl.BlockSpec((f, h), lambda i, j: (0, 0)),     # w1 (full)
                pl.BlockSpec((1, h), lambda i, j: (0, 0)),     # w2[:, target] / N
            ],
            out_specs=pl.BlockSpec((tm, f), lambda i, j: (i, 0)),
            scratch_shapes=[
                pltpu.VMEM((tm, h), jnp.float32),   # delta-pooled accumulator
                pltpu.VMEM((tm, h), jnp.float32),   # x[i, f_i] * w1[f_i, :]
                pltpu.VMEM((tm, f), jnp.float32),   # argmax one-hot
            ]),
        compiler_params=pltpu.CompilerParams(
            dimension_semantics=("parallel", "arbitrary"),
            vmem_limit_bytes=32 * 1024 * 1024),
    )(x, a_hat_t, pre, w1, w2_t)


def _reference(x, a_hat, w1, w2, target):
    """Pure-JAX reference reproducing the PyTorch loop semantics (vectorized)."""
    def fwd(xin):
        hidden = jnp.maximum((a_hat @ xin) @ w1, 0.0)
        return jnp.mean(hidden, axis=0, keepdims=True) @ w2       # [1, C]

    y = fwd(x)
    n = x.shape[0]
    feat = jnp.argmax(x, axis=1)                                  # first occurrence

    def per_node(node):
        xp = x.at[node, feat[node]].set(0.0)
        return (y - fwd(xp))[0, target]

    deltas = jax.vmap(per_node)(jnp.arange(n))
    return jnp.zeros_like(x).at[jnp.arange(n), feat].set(deltas)


if __name__ == "__main__":
    # Small synthetic graph; N = 256 so the ablation kernel runs a real (2 x 2)
    # grid with 128-wide tiles on both the parallel and reduction axes.
    N, F, H, C = 256, 16, 32, 4

    key = jax.random.PRNGKey(0)
    kx, kw1, kw2 = jax.random.split(key, 3)
    x = jax.random.normal(kx, (N, F), dtype=jnp.float32)
    w1 = jax.random.normal(kw1, (F, H), dtype=jnp.float32) * 0.1
    w2 = jax.random.normal(kw2, (H, C), dtype=jnp.float32) * 0.1

    # Deterministic edge_index (2, E): ring graph, made undirected.
    src = np.arange(N)
    dst = (np.arange(N) + 1) % N
    edge_index = np.stack([np.concatenate([src, dst]),
                           np.concatenate([dst, src])], axis=0)   # [2, 2N]

    # Dense normalized adjacency A_hat = D^-1 (A + I)   (plain numpy glue).
    adj = np.zeros((N, N), dtype=np.float32)
    adj[edge_index[0], edge_index[1]] = 1.0
    adj = adj + np.eye(N, dtype=np.float32)
    a_hat = jnp.asarray(adj / adj.sum(axis=1, keepdims=True))

    target = 1  # data.y (graph label)

    attribution = graph_feature_ablation(x, a_hat, w1, w2, target)
    attribution = jax.block_until_ready(attribution)

    ref = _reference(x, a_hat, w1, w2, target)
    np.testing.assert_allclose(np.asarray(attribution), np.asarray(ref),
                               rtol=1e-4, atol=1e-5)

    print("KERNEL_OK")
</pallas_src>

<mosaic_0001>
module attributes {stable_mosaic.version = 11 : i64} {
  func.func @_pre_kernel(%arg0: memref<256x16xf32, #tpu.memory_space<vmem>>, %arg1: memref<256x256xf32, #tpu.memory_space<vmem>>, %arg2: memref<16x32xf32, #tpu.memory_space<vmem>>, %arg3: memref<256x32xf32, #tpu.memory_space<vmem>>) attributes {dimension_semantics = [], scalar_prefetch = 0 : i64, scratch_operands = 0 : i64, tpu.core_type = #tpu.core_type<tc>} {
    %c0 = arith.constant 0 : index
    %c0_0 = arith.constant 0 : index
    %0 = vector.load %arg1[%c0, %c0_0] : memref<256x256xf32, #tpu.memory_space<vmem>>, vector<256x256xf32>
    %c0_1 = arith.constant 0 : index
    %c0_2 = arith.constant 0 : index
    %1 = vector.load %arg0[%c0_1, %c0_2] : memref<256x16xf32, #tpu.memory_space<vmem>>, vector<256x16xf32>
    %cst = arith.constant dense<0.000000e+00> : vector<256x16xf32>
    %2 = tpu.matmul %0, %1, %cst {dimension_numbers = #tpu.dot_dimension_numbers<[0], [0], [1], [1], [0, 1, 1, 1], [], []>} : vector<256x256xf32>, vector<256x16xf32>, vector<256x16xf32> -> vector<256x16xf32>
    %c0_3 = arith.constant 0 : index
    %c0_4 = arith.constant 0 : index
    %3 = vector.load %arg2[%c0_3, %c0_4] : memref<16x32xf32, #tpu.memory_space<vmem>>, vector<16x32xf32>
    %cst_5 = arith.constant dense<0.000000e+00> : vector<256x32xf32>
    %4 = tpu.matmul %2, %3, %cst_5 {dimension_numbers = #tpu.dot_dimension_numbers<[1], [0], [0], [1], [0, 0, 1, 1], [], []>} : vector<256x16xf32>, vector<16x32xf32>, vector<256x32xf32> -> vector<256x32xf32>
    %c0_6 = arith.constant 0 : index
    %c0_7 = arith.constant 0 : index
    %5 = vector.load %arg3[%c0_6, %c0_7] : memref<256x32xf32, #tpu.memory_space<vmem>>, vector<256x32xf32>
    tpu.vector_store %arg3[%c0_6, %c0_7], %4 {strides = array<i32>} : memref<256x32xf32, #tpu.memory_space<vmem>>, vector<256x32xf32>,
    return
  }
}

</mosaic_0001>

<llo_original>
// kernel: tpu_custom_call.1
$region0: #{tpu_custom_call.1}
  #allocation0 [shape = 'u32[]', space=smem, size = 0x4, offset = 0x4, fixed_abs, tag = 'smem constant byte address 0x4 - core index']
  #allocation1 [shape = 'u32[144,128]{1,0:T(1,128)}', space=vmem, size = 0x12000, scoped, tag = 'internal scratch']
  %s0 = inlined_call_operand.vmem [shape: f32[256,16], index: 0, kind: input, shape index: {}]
  %s1 = inlined_call_operand.hbm [shape: f32[256,256], index: 1, kind: input, shape index: {}]
  %s2 = inlined_call_operand.vmem [shape: f32[16,32], index: 2, kind: input, shape index: {}]
  %s3 = inlined_call_operand.vmem [shape: f32[256,32], index: 3, kind: output, shape index: {}]
  %s4 = sld [smem:[#allocation0]]
  $region26: #{tpu_custom_call.1} parent=0
    _
  %s6 = ssub.s32 1, %s4
  %s7 = scalar_select 0, %s6, %s4
  $region1: #{tpu_custom_call.1} parent=0
    #allocation2 [shape = 'u8[262144]{0}', space=vmem, size = 0x40000, scoped, tag = 'input window, operand 1, single buffered']
    #allocation3 [shape = 's32[1]{0}', space=sflag, size = 0x4, scoped, tag = 'scoped memory for tpu_custom_call.1']
    %8 = vsyncpa [#allocation3], 0
    // Predicated region
    $region2: #{tpu_custom_call.1} parent=1 // pred_check
      _
    $region3: #{tpu_custom_call.1} parent=1 // pred_check_branch
      %10 = sbr.rel (0) target = $region5
    $region4: #{tpu_custom_call.1} parent=1 // pred_region
      _
    $region5: #{tpu_custom_call.1} parent=1 // pred_fallthru
      _
    // Predicated region
    $region6: #{tpu_custom_call.1} parent=1 // pred_check
      _
    $region7: #{tpu_custom_call.1} parent=1 // pred_check_branch
      %12 = sbr.rel (0) target = $region9
    $region8: #{tpu_custom_call.1} parent=1 // pred_region
      %s14 = ssub.s32 8192, 8192
      %15 = vsyncadd [#allocation3], %s14
      %s16 = sshll.u32 [#allocation2], 4
      %s17 = int_to_ptr.vmem [resolvable:$true] %s16
      %22 = dma.hbm_to_vmem [thread:$0]  %s1, 8192, %s17, [#allocation3], 256, 256, 16
    $region9: #{tpu_custom_call.1} parent=1 // pred_fallthru
      _
    // Predicated region
    $region10: #{tpu_custom_call.1} parent=1 // pred_check
      _
    $region11: #{tpu_custom_call.1} parent=1 // pred_check_branch
      %24 = sbr.rel (0) target = $region13
    $region12: #{tpu_custom_call.1} parent=1 // pred_region
      _
    $region13: #{tpu_custom_call.1} parent=1 // pred_fallthru
      _
    // Predicated region
    $region14: #{tpu_custom_call.1} parent=1 // pred_check
      _
    $region15: #{tpu_custom_call.1} parent=1 // pred_check_branch
      %26 = sbr.rel (0) target = $region17
    $region16: #{tpu_custom_call.1} parent=1 // pred_region
      %27 = dma.done [#allocation3], 8192
    $region17: #{tpu_custom_call.1} parent=1 // pred_fallthru
      _
    %v28 = vld [vmem:[#allocation2] sm:$0xff]
    %v29 = vld [vmem:[#allocation2 + $0x8] sm:$0xff]
    %v30 = vld [vmem:[#allocation2 + $0x10] sm:$0xff]
    %v31 = vld [vmem:[#allocation2 + $0x18] sm:$0xff]
    %v32 = vld [vmem:[#allocation2 + $0x20] sm:$0xff]
    %v33 = vld [vmem:[#allocation2 + $0x28] sm:$0xff]
    %v34 = vld [vmem:[#allocation2 + $0x30] sm:$0xff]
    %v35 = vld [vmem:[#allocation2 + $0x38] sm:$0xff]
    %v36 = vld [vmem:[#allocation2 + $0x40] sm:$0xff]
    %v37 = vld [vmem:[#allocation2 + $0x48] sm:$0xff]
    %v38 = vld [vmem:[#allocation2 + $0x50] sm:$0xff]
    %v39 = vld [vmem:[#allocation2 + $0x58] sm:$0xff]
    %v40 = vld [vmem:[#allocation2 + $0x60] sm:$0xff]
    %v41 = vld [vmem:[#allocation2 + $0x68] sm:$0xff]
    %v42 = vld [vmem:[#allocation2 + $0x70] sm:$0xff]
    %v43 = vld [vmem:[#allocation2 + $0x78] sm:$0xff]
    %v44 = vld [vmem:[#allocation2 + $0x80] sm:$0xff]
    %v45 = vld [vmem:[#allocation2 + $0x88] sm:$0xff]
    %v46 = vld [vmem:[#allocation2 + $0x90] sm:$0xff]
    %v47 = vld [vmem:[#allocation2 + $0x98] sm:$0xff]
    %v48 = vld [vmem:[#allocation2 + $0xa0] sm:$0xff]
    %v49 = vld [vmem:[#allocation2 + $0xa8] sm:$0xff]
    %v50 = vld [vmem:[#allocation2 + $0xb0] sm:$0xff]
    %v51 = vld [vmem:[#allocation2 + $0xb8] sm:$0xff]
    %v52 = vld [vmem:[#allocation2 + $0xc0] sm:$0xff]
    %v53 = vld [vmem:[#allocation2 + $0xc8] sm:$0xff]
    %v54 = vld [vmem:[#allocation2 + $0xd0] sm:$0xff]
    %v55 = vld [vmem:[#allocation2 + $0xd8] sm:$0xff]
    %v56 = vld [vmem:[#allocation2 + $0xe0] sm:$0xff]
    %v57 = vld [vmem:[#allocation2 + $0xe8] sm:$0xff]
    %v58 = vld [vmem:[#allocation2 + $0xf0] sm:$0xff]
    %v59 = vld [vmem:[#allocation2 + $0xf8] sm:$0xff]
    %v60 = vld [vmem:[#allocation2 + $0x100] sm:$0xff]
    %v61 = vld [vmem:[#allocation2 + $0x108] sm:$0xff]
    %v62 = vld [vmem:[#allocation2 + $0x110] sm:$0xff]
    %v63 = vld [vmem:[#allocation2 + $0x118] sm:$0xff]
    %v64 = vld [vmem:[#allocation2 + $0x120] sm:$0xff]
    %v65 = vld [vmem:[#allocation2 + $0x128] sm:$0xff]
    %v66 = vld [vmem:[#allocation2 + $0x130] sm:$0xff]
    %v67 = vld [vmem:[#allocation2 + $0x138] sm:$0xff]
    %v68 = vld [vmem:[#allocation2 + $0x140] sm:$0xff]
    %v69 = vld [vmem:[#allocation2 + $0x148] sm:$0xff]
    %v70 = vld [vmem:[#allocation2 + $0x150] sm:$0xff]
    %v71 = vld [vmem:[#allocation2 + $0x158] sm:$0xff]
    %v72 = vld [vmem:[#allocation2 + $0x160] sm:$0xff]
    %v73 = vld [vmem:[#allocation2 + $0x168] sm:$0xff]
    %v74 = vld [vmem:[#allocation2 + $0x170] sm:$0xff]
    %v75 = vld [vmem:[#allocation2 + $0x178] sm:$0xff]
    %v76 = vld [vmem:[#allocation2 + $0x180] sm:$0xff]
    %v77 = vld [vmem:[#allocation2 + $0x188] sm:$0xff]
    %v78 = vld [vmem:[#allocation2 + $0x190] sm:$0xff]
    %v79 = vld [vmem:[#allocation2 + $0x198] sm:$0xff]
    %v80 = vld [vmem:[#allocation2 + $0x1a0] sm:$0xff]
    %v81 = vld [vmem:[#allocation2 + $0x1a8] sm:$0xff]
    %v82 = vld [vmem:[#allocation2 + $0x1b0] sm:$0xff]
    %v83 = vld [vmem:[#allocation2 + $0x1b8] sm:$0xff]
    %v84 = vld [vmem:[#allocation2 + $0x1c0] sm:$0xff]
    %v85 = vld [vmem:[#allocation2 + $0x1c8] sm:$0xff]
    %v86 = vld [vmem:[#allocation2 + $0x1d0] sm:$0xff]
    %v87 = vld [vmem:[#allocation2 + $0x1d8] sm:$0xff]
    %v88 = vld [vmem:[#allocation2 + $0x1e0] sm:$0xff]
    %v89 = vld [vmem:[#allocation2 + $0x1e8] sm:$0xff]
    %v90 = vld [vmem:[#allocation2 + $0x1f0] sm:$0xff]
    %v91 = vld [vmem:[#allocation2 + $0x1f8] sm:$0xff]
    %v92 = vld [vmem:[%s0] sm:$0xff]
    %v93 = vld [vmem:[%s0 + $0x8] sm:$0xff]
    %v94 = vld [vmem:[%s0 + $0x10] sm:$0xff]
    %v95 = vld [vmem:[%s0 + $0x18] sm:$0xff]
    %v96 = vld [vmem:[%s0 + $0x20] sm:$0xff]
    %v97 = vld [vmem:[%s0 + $0x28] sm:$0xff]
    %v98 = vld [vmem:[%s0 + $0x30] sm:$0xff]
    %v99 = vld [vmem:[%s0 + $0x38] sm:$0xff]
    %v100 = vld [vmem:[%s0 + $0x40] sm:$0xff]
    %v101 = vld [vmem:[%s0 + $0x48] sm:$0xff]
    %v102 = vld [vmem:[%s0 + $0x50] sm:$0xff]
    %v103 = vld [vmem:[%s0 + $0x58] sm:$0xff]
    %v104 = vld [vmem:[%s0 + $0x60] sm:$0xff]
    %v105 = vld [vmem:[%s0 + $0x68] sm:$0xff]
    %v106 = vld [vmem:[%s0 + $0x70] sm:$0xff]
    %v107 = vld [vmem:[%s0 + $0x78] sm:$0xff]
    %v108 = vld [vmem:[%s0 + $0x80] sm:$0xff]
    %v109 = vld [vmem:[%s0 + $0x88] sm:$0xff]
    %v110 = vld [vmem:[%s0 + $0x90] sm:$0xff]
    %v111 = vld [vmem:[%s0 + $0x98] sm:$0xff]
    %v112 = vld [vmem:[%s0 + $0xa0] sm:$0xff]
    %v113 = vld [vmem:[%s0 + $0xa8] sm:$0xff]
    %v114 = vld [vmem:[%s0 + $0xb0] sm:$0xff]
    %v115 = vld [vmem:[%s0 + $0xb8] sm:$0xff]
    %v116 = vld [vmem:[%s0 + $0xc0] sm:$0xff]
    %v117 = vld [vmem:[%s0 + $0xc8] sm:$0xff]
    %v118 = vld [vmem:[%s0 + $0xd0] sm:$0xff]
    %v119 = vld [vmem:[%s0 + $0xd8] sm:$0xff]
    %v120 = vld [vmem:[%s0 + $0xe0] sm:$0xff]
    %v121 = vld [vmem:[%s0 + $0xe8] sm:$0xff]
    %v122 = vld [vmem:[%s0 + $0xf0] sm:$0xff]
    %v123 = vld [vmem:[%s0 + $0xf8] sm:$0xff]
    %124 = vxpose.xlu0.b32.start [1/16] %v28, 128
    %125 = vxpose.xlu0.b32.cont [2/16] %v30, 128
    %126 = vxpose.xlu0.b32.cont [3/16] %v32, 128
    %127 = vxpose.xlu0.b32.cont [4/16] %v34, 128
    %128 = vxpose.xlu0.b32.cont [5/16] %v36, 128
    %129 = vxpose.xlu0.b32.cont [6/16] %v38, 128
    %130 = vxpose.xlu0.b32.cont [7/16] %v40, 128
    %131 = vxpose.xlu0.b32.cont [8/16] %v42, 128
    %132 = vxpose.xlu0.b32.cont [9/16] %v44, 128
    %133 = vxpose.xlu0.b32.cont [10/16] %v46, 128
    %134 = vxpose.xlu0.b32.cont [11/16] %v48, 128
    %135 = vxpose.xlu0.b32.cont [12/16] %v50, 128
    %136 = vxpose.xlu0.b32.cont [13/16] %v52, 128
    %137 = vxpose.xlu0.b32.cont [14/16] %v54, 128
    %138 = vxpose.xlu0.b32.cont [15/16] %v56, 128
    %139 = vxpose.xlu0.b32.end [16/16] %v58, 128
    %v140 = vpop.trf.xlu0
    %v141 = vpop.trf.xlu0
    %v142 = vpop.trf.xlu0
    %v143 = vpop.trf.xlu0
    %v144 = vpop.trf.xlu0
    %v145 = vpop.trf.xlu0
    %v146 = vpop.trf.xlu0
    %v147 = vpop.trf.xlu0
    %v148 = vpop.trf.xlu0
    %v149 = vpop.trf.xlu0
    %v150 = vpop.trf.xlu0
    %v151 = vpop.trf.xlu0
    %v152 = vpop.trf.xlu0
    %v153 = vpop.trf.xlu0
    %v154 = vpop.trf.xlu0
    %v155 = vpop.trf.xlu0
    %156 = vxpose.xlu0.b32.start [1/16] %v29, 128
    %157 = vxpose.xlu0.b32.cont [2/16] %v31, 128
    %158 = vxpose.xlu0.b32.cont [3/16] %v33, 128
    %159 = vxpose.xlu0.b32.cont [4/16] %v35, 128
    %160 = vxpose.xlu0.b32.cont [5/16] %v37, 128
    %161 = vxpose.xlu0.b32.cont [6/16] %v39, 128
    %162 = vxpose.xlu0.b32.cont [7/16] %v41, 128
    %163 = vxpose.xlu0.b32.cont [8/16] %v43, 128
    %164 = vxpose.xlu0.b32.cont [9/16] %v45, 128
    %165 = vxpose.xlu0.b32.cont [10/16] %v47, 128
    %166 = vxpose.xlu0.b32.cont [11/16] %v49, 128
    %167 = vxpose.xlu0.b32.cont [12/16] %v51, 128
    %168 = vxpose.xlu0.b32.cont [13/16] %v53, 128
    %169 = vxpose.xlu0.b32.cont [14/16] %v55, 128
    %170 = vxpose.xlu0.b32.cont [15/16] %v57, 128
    %171 = vxpose.xlu0.b32.end [16/16] %v59, 128
    %v172 = vpop.trf.xlu0
    %v173 = vpop.trf.xlu0
    %v174 = vpop.trf.xlu0
    %v175 = vpop.trf.xlu0
    %v176 = vpop.trf.xlu0
    %v177 = vpop.trf.xlu0
    %v178 = vpop.trf.xlu0
    %v179 = vpop.trf.xlu0
    %v180 = vpop.trf.xlu0
    %v181 = vpop.trf.xlu0
    %v182 = vpop.trf.xlu0
    %v183 = vpop.trf.xlu0
    %v184 = vpop.trf.xlu0
    %v185 = vpop.trf.xlu0
    %v186 = vpop.trf.xlu0
    %v187 = vpop.trf.xlu0
    %188 = vxpose.xlu0.b32.start [1/16] %v60, 128
    %189 = vxpose.xlu0.b32.cont [2/16] %v62, 128
    %190 = vxpose.xlu0.b32.cont [3/16] %v64, 128
    %191 = vxpose.xlu0.b32.cont [4/16] %v66, 128
    %192 = vxpose.xlu0.b32.cont [5/16] %v68, 128
    %193 = vxpose.xlu0.b32.cont [6/16] %v70, 128
    %194 = vxpose.xlu0.b32.cont [7/16] %v72, 128
    %195 = vxpose.xlu0.b32.cont [8/16] %v74, 128
    %196 = vxpose.xlu0.b32.cont [9/16] %v76, 128
    %197 = vxpose.xlu0.b32.cont [10/16] %v78, 128
    %198 = vxpose.xlu0.b32.cont [11/16] %v80, 128
    %199 = vxpose.xlu0.b32.cont [12/16] %v82, 128
    %200 = vxpose.xlu0.b32.cont [13/16] %v84, 128
    %201 = vxpose.xlu0.b32.cont [14/16] %v86, 128
    %202 = vxpose.xlu0.b32.cont [15/16] %v88, 128
    %203 = vxpose.xlu0.b32.end [16/16] %v90, 128
    %v204 = vpop.trf.xlu0
    %v205 = vpop.trf.xlu0
    %v206 = vpop.trf.xlu0
    %v207 = vpop.trf.xlu0
    %v208 = vpop.trf.xlu0
    %v209 = vpop.trf.xlu0
    %v210 = vpop.trf.xlu0
    %v211 = vpop.trf.xlu0
    %v212 = vpop.trf.xlu0
    %v213 = vpop.trf.xlu0
    %v214 = vpop.trf.xlu0
    %v215 = vpop.trf.xlu0
    %v216 = vpop.trf.xlu0
    %v217 = vpop.trf.xlu0
    %v218 = vpop.trf.xlu0
    %v219 = vpop.trf.xlu0
    %220 = vxpose.xlu0.b32.start [1/16] %v61, 128
    %221 = vxpose.xlu0.b32.cont [2/16] %v63, 128
    %222 = vxpose.xlu0.b32.cont [3/16] %v65, 128
    %223 = vxpose.xlu0.b32.cont [4/16] %v67, 128
    %224 = vxpose.xlu0.b32.cont [5/16] %v69, 128
    %225 = vxpose.xlu0.b32.cont [6/16] %v71, 128
    %226 = vxpose.xlu0.b32.cont [7/16] %v73, 128
    %227 = vxpose.xlu0.b32.cont [8/16] %v75, 128
    %228 = vxpose.xlu0.b32.cont [9/16] %v77, 128
    %229 = vxpose.xlu0.b32.cont [10/16] %v79, 128
    %230 = vxpose.xlu0.b32.cont [11/16] %v81, 128
    %231 = vxpose.xlu0.b32.cont [12/16] %v83, 128
    %232 = vxpose.xlu0.b32.cont [13/16] %v85, 128
    %233 = vxpose.xlu0.b32.cont [14/16] %v87, 128
    %234 = vxpose.xlu0.b32.cont [15/16] %v89, 128
    %235 = vxpose.xlu0.b32.end [16/16] %v91, 128
    %v236 = vpop.trf.xlu0
    %v237 = vpop.trf.xlu0
    %v238 = vpop.trf.xlu0
    %v239 = vpop.trf.xlu0
    %v240 = vpop.trf.xlu0
    %v241 = vpop.trf.xlu0
    %v242 = vpop.trf.xlu0
    %v243 = vpop.trf.xlu0
    %v244 = vpop.trf.xlu0
    %v245 = vpop.trf.xlu0
    %v246 = vpop.trf.xlu0
    %v247 = vpop.trf.xlu0
    %v248 = vpop.trf.xlu0
    %v249 = vpop.trf.xlu0
    %v250 = vpop.trf.xlu0
    %v251 = vpop.trf.xlu0
    %252 = vmatprep.subr.mxu0 0.0
    %253 = vmatpush1.msra.mxu0 %v92
    %254 = vmatprep.subr.mxu0 0.0
    %255 = vmatpush1.msra.mxu0 %v93
    %256 = vmatprep.subr.mxu0 0.0
    %257 = vmatpush1.msra.mxu0 %v94
    %258 = vmatprep.subr.mxu0 0.0
    %259 = vmatpush1.msra.mxu0 %v95
    %260 = vmatprep.subr.mxu0 0.0
    %261 = vmatpush1.msra.mxu0 %v96
    %262 = vmatprep.subr.mxu0 0.0
    %263 = vmatpush1.msra.mxu0 %v97
    %264 = vmatprep.subr.mxu0 0.0
    %265 = vmatpush1.msra.mxu0 %v98
    %266 = vmatprep.subr.mxu0 0.0
    %267 = vmatpush1.msra.mxu0 %v99
    %268 = vmatprep.subr.mxu0 0.0
    %269 = vmatpush1.msra.mxu0 %v100
    %270 = vmatprep.subr.mxu0 0.0
    %271 = vmatpush1.msra.mxu0 %v101
    %272 = vmatprep.subr.mxu0 0.0
    %273 = vmatpush1.msra.mxu0 %v102
    %274 = vmatprep.subr.mxu0 0.0
    %275 = vmatpush1.msra.mxu0 %v103
    %276 = vmatprep.subr.mxu0 0.0
    %277 = vmatpush1.msra.mxu0 %v104
    %278 = vmatprep.subr.mxu0 0.0
    %279 = vmatpush1.msra.mxu0 %v105
    %280 = vmatprep.subr.mxu0 0.0
    %281 = vmatpush1.msra.mxu0 %v106
    %282 = vmatprep.subr.mxu0 0.0
    %283 = vmatpush1.msra.mxu0 %v107
    %284 = vmatprep.subr.mxu0 0.0
    %285 = vmatpush1.msra.mxu0 %v108
    %286 = vmatprep.subr.mxu0 0.0
    %287 = vmatpush1.msra.mxu0 %v109
    %288 = vmatprep.subr.mxu0 0.0
    %289 = vmatpush1.msra.mxu0 %v110
    %290 = vmatprep.subr.mxu0 0.0
    %291 = vmatpush1.msra.mxu0 %v111
    %292 = vmatprep.subr.mxu0 0.0
    %293 = vmatpush1.msra.mxu0 %v112
    %294 = vmatprep.subr.mxu0 0.0
    %295 = vmatpush1.msra.mxu0 %v113
    %296 = vmatprep.subr.mxu0 0.0
    %297 = vmatpush1.msra.mxu0 %v114
    %298 = vmatprep.subr.mxu0 0.0
    %299 = vmatpush1.msra.mxu0 %v115
    %300 = vmatprep.subr.mxu0 0.0
    %301 = vmatpush1.msra.mxu0 %v116
    %302 = vmatprep.subr.mxu0 0.0
    %303 = vmatpush1.msra.mxu0 %v117
    %304 = vmatprep.subr.mxu0 0.0
    %305 = vmatpush1.msra.mxu0 %v118
    %306 = vmatprep.subr.mxu0 0.0
    %307 = vmatpush1.msra.mxu0 %v119
    %308 = vmatprep.subr.mxu0 0.0
    %309 = vmatpush1.msra.mxu0 %v120
    %310 = vmatprep.subr.mxu0 0.0
    %311 = vmatpush1.msra.mxu0 %v121
    %312 = vmatprep.subr.mxu0 0.0
    %313 = vmatpush1.msra.mxu0 %v122
    %314 = vmatprep.subr.mxu0 0.0
    %315 = vmatpush1.msra.mxu0 %v123
    %316 = vmatprep.mubr.f32.mxu0 %v204
    %317 = vmatmul.mubr.f32.gmra.mrb[0].mxu0 %v140
    %v318 = vpop.f32.mrb[0].mxu0
    %v319 = vadd.f32 0.0, %v318
    %v320 = vpop.f32.mrb[0].mxu0
    %321 = vmatprep.mubr.f32.mxu0 %v205
    %322 = vmatmul.mubr.f32.gmra.mrb[0].mxu0 %v141
    %v323 = vpop.f32.mrb[0].mxu0
    %v324 = vadd.f32 0.0, %v323
    %v325 = vpop.f32.mrb[0].mxu0
    %326 = vmatprep.mubr.f32.mxu0 %v206
    %327 = vmatmul.mubr.f32.gmra.mrb[0].mxu0 %v142
    %v328 = vpop.f32.mrb[0].mxu0
    %v329 = vadd.f32 0.0, %v328
    %v330 = vpop.f32.mrb[0].mxu0
    %331 = vmatprep.mubr.f32.mxu0 %v207
    %332 = vmatmul.mubr.f32.gmra.mrb[0].mxu0 %v143
    %v333 = vpop.f32.mrb[0].mxu0
    %v334 = vadd.f32 0.0, %v333
    %v335 = vpop.f32.mrb[0].mxu0
    %336 = vmatprep.mubr.f32.mxu0 %v208
    %337 = vmatmul.mubr.f32.gmra.mrb[0].mxu0 %v144
    %v338 = vpop.f32.mrb[0].mxu0
    %v339 = vadd.f32 0.0, %v338
    %v340 = vpop.f32.mrb[0].mxu0
    %341 = vmatprep.mubr.f32.mxu0 %v209
    %342 = vmatmul.mubr.f32.gmra.mrb[0].mxu0 %v145
    %v343 = vpop.f32.mrb[0].mxu0
    %v344 = vadd.f32 0.0, %v343
    %v345 = vpop.f32.mrb[0].mxu0
    %346 = vmatprep.mubr.f32.mxu0 %v210
    %347 = vmatmul.mubr.f32.gmra.mrb[0].mxu0 %v146
    %v348 = vpop.f32.mrb[0].mxu0
    %v349 = vadd.f32 0.0, %v348
    %v350 = vpop.f32.mrb[0].mxu0
    %351 = vmatprep.mubr.f32.mxu0 %v211
    %352 = vmatmul.mubr.f32.gmra.mrb[0].mxu0 %v147
    %v353 = vpop.f32.mrb[0].mxu0
    %v354 = vadd.f32 0.0, %v353
    %v355 = vpop.f32.mrb[0].mxu0
    %356 = vmatprep.mubr.f32.mxu0 %v212
    %357 = vmatmul.mubr.f32.gmra.mrb[0].mxu0 %v148
    %v358 = vpop.f32.mrb[0].mxu0
    %v359 = vadd.f32 0.0, %v358
    %v360 = vpop.f32.mrb[0].mxu0
    %361 = vmatprep.mubr.f32.mxu0 %v213
    %362 = vmatmul.mubr.f32.gmra.mrb[0].mxu0 %v149
    %v363 = vpop.f32.mrb[0].mxu0
    %v364 = vadd.f32 0.0, %v363
    %v365 = vpop.f32.mrb[0].mxu0
    %366 = vmatprep.mubr.f32.mxu0 %v214
    %367 = vmatmul.mubr.f32.gmra.mrb[0].mxu0 %v150
    %v368 = vpop.f32.mrb[0].mxu0
    %v369 = vadd.f32 0.0, %v368
    %v370 = vpop.f32.mrb[0].mxu0
    %371 = vmatprep.mubr.f32.mxu0 %v215
    %372 = vmatmul.mubr.f32.gmra.mrb[0].mxu0 %v151
    %v373 = vpop.f32.mrb[0].mxu0
    %v374 = vadd.f32 0.0, %v373
    %v375 = vpop.f32.mrb[0].mxu0
    %376 = vmatprep.mubr.f32.mxu0 %v216
    %377 = vmatmul.mubr.f32.gmra.mrb[0].mxu0 %v152
    %v378 = vpop.f32.mrb[0].mxu0
    %v379 = vadd.f32 0.0, %v378
    %v380 = vpop.f32.mrb[0].mxu0
    %381 = vmatprep.mubr.f32.mxu0 %v217
    %382 = vmatmul.mubr.f32.gmra.mrb[0].mxu0 %v153
    %v383 = vpop.f32.mrb[0].mxu0
    %v384 = vadd.f32 0.0, %v383
    %v385 = vpop.f32.mrb[0].mxu0
    %386 = vmatprep.mubr.f32.mxu0 %v218
    %387 = vmatmul.mubr.f32.gmra.mrb[0].mxu0 %v154
    %v388 = vpop.f32.mrb[0].mxu0
    %v389 = vadd.f32 0.0, %v388
    %v390 = vpop.f32.mrb[0].mxu0
    %391 = vmatprep.mubr.f32.mxu0 %v219
    %392 = vmatmul.mubr.f32.gmra.mrb[0].mxu0 %v155
    %v393 = vpop.f32.mrb[0].mxu0
    %v394 = vadd.f32 0.0, %v393
    %v395 = vpop.f32.mrb[0].mxu0
    %396 = vmatprep.mubr.f32.mxu0 %v236
    %397 = vmatmul.mubr.f32.gmra.mrb[0].mxu0 %v172
    %v398 = vpop.f32.mrb[0].mxu0
    %v399 = vadd.f32 0.0, %v398
    %v400 = vpop.f32.mrb[0].mxu0
    %401 = vmatprep.mubr.f32.mxu0 %v237
    %402 = vmatmul.mubr.f32.gmra.mrb[0].mxu0 %v173
    %v403 = vpop.f32.mrb[0].mxu0
    %v404 = vadd.f32 0.0, %v403
    %v405 = vpop.f32.mrb[0].mxu0
    %406 = vmatprep.mubr.f32.mxu0 %v238
    %407 = vmatmul.mubr.f32.gmra.mrb[0].mxu0 %v174
    %v408 = vpop.f32.mrb[0].mxu0
    %v409 = vadd.f32 0.0, %v408
    %v410 = vpop.f32.mrb[0].mxu0
    %411 = vmatprep.mubr.f32.mxu0 %v239
    %412 = vmatmul.mubr.f32.gmra.mrb[0].mxu0 %v175
    %v413 = vpop.f32.mrb[0].mxu0
    %v414 = vadd.f32 0.0, %v413
    %v415 = vpop.f32.mrb[0].mxu0
    %416 = vmatprep.mubr.f32.mxu0 %v240
    %417 = vmatmul.mubr.f32.gmra.mrb[0].mxu0 %v176
    %v418 = vpop.f32.mrb[0].mxu0
    %v419 = vadd.f32 0.0, %v418
    %v420 = vpop.f32.mrb[0].mxu0
    %421 = vmatprep.mubr.f32.mxu0 %v241
    %422 = vmatmul.mubr.f32.gmra.mrb[0].mxu0 %v177
    %v423 = vpop.f32.mrb[0].mxu0
    %v424 = vadd.f32 0.0, %v423
    %v425 = vpop.f32.mrb[0].mxu0
    %426 = vmatprep.mubr.f32.mxu0 %v242
    %427 = vmatmul.mubr.f32.gmra.mrb[0].mxu0 %v178
    %v428 = vpop.f32.mrb[0].mxu0
    %v429 = vadd.f32 0.0, %v428
    %v430 = vpop.f32.mrb[0].mxu0
    %431 = vmatprep.mubr.f32.mxu0 %v243
    %432 = vmatmul.mubr.f32.gmra.mrb[0].mxu0 %v179
    %v433 = vpop.f32.mrb[0].mxu0
    %v434 = vadd.f32 0.0, %v433
    %v435 = vpop.f32.mrb[0].mxu0
    %436 = vmatprep.mubr.f32.mxu0 %v244
    %437 = vmatmul.mubr.f32.gmra.mrb[0].mxu0 %v180
    %v438 = vpop.f32.mrb[0].mxu0
    %v439 = vadd.f32 0.0, %v438
    %v440 = vpop.f32.mrb[0].mxu0
    %441 = vmatprep.mubr.f32.mxu0 %v245
    %442 = vmatmul.mubr.f32.gmra.mrb[0].mxu0 %v181
    %v443 = vpop.f32.mrb[0].mxu0
    %v444 = vadd.f32 0.0, %v443
    %v445 = vpop.f32.mrb[0].mxu0
    %446 = vmatprep.mubr.f32.mxu0 %v246
    %447 = vmatmul.mubr.f32.gmra.mrb[0].mxu0 %v182
    %v448 = vpop.f32.mrb[0].mxu0
    %v449 = vadd.f32 0.0, %v448
    %v450 = vpop.f32.mrb[0].mxu0
    %451 = vmatprep.mubr.f32.mxu0 %v247
    %452 = vmatmul.mubr.f32.gmra.mrb[0].mxu0 %v183
    %v453 = vpop.f32.mrb[0].mxu0
    %v454 = vadd.f32 0.0, %v453
    %v455 = vpop.f32.mrb[0].mxu0
    %456 = vmatprep.mubr.f32.mxu0 %v248
    %457 = vmatmul.mubr.f32.gmra.mrb[0].mxu0 %v184
    %v458 = vpop.f32.mrb[0].mxu0
    %v459 = vadd.f32 0.0, %v458
    %v460 = vpop.f32.mrb[0].mxu0
    %461 = vmatprep.mubr.f32.mxu0 %v249
    %462 = vmatmul.mubr.f32.gmra.mrb[0].mxu0 %v185
    %v463 = vpop.f32.mrb[0].mxu0
    %v464 = vadd.f32 0.0, %v463
    %v465 = vpop.f32.mrb[0].mxu0
    %466 = vmatprep.mubr.f32.mxu0 %v250
    %467 = vmatmul.mubr.f32.gmra.mrb[0].mxu0 %v186
    %v468 = vpop.f32.mrb[0].mxu0
    %v469 = vadd.f32 0.0, %v468
    %v470 = vpop.f32.mrb[0].mxu0
    %471 = vmatprep.mubr.f32.mxu0 %v251
    %472 = vmatmul.mubr.f32.gmra.mrb[0].mxu0 %v187
    %v473 = vpop.f32.mrb[0].mxu0
    %v474 = vadd.f32 0.0, %v473
    %v475 = vpop.f32.mrb[0].mxu0
    %476 = vdwg.mxu0
    %v477 = vld [vmem:[%s2] sm:$0xff]
    %v478 = vld [vmem:[%s2 + $0x8] sm:$0xff]
    %vm479 = vcmask 130048
    %v481 = vsel %vm479, %v319, 0
    %v484 = vsel %vm479, %v324, 0
    %v487 = vsel %vm479, %v329, 0
    %v490 = vsel %vm479, %v334, 0
    %v493 = vsel %vm479, %v339, 0
    %v496 = vsel %vm479, %v344, 0
    %v499 = vsel %vm479, %v349, 0
    %v502 = vsel %vm479, %v354, 0
    %v505 = vsel %vm479, %v359, 0
    %v508 = vsel %vm479, %v364, 0
    %v511 = vsel %vm479, %v369, 0
    %v514 = vsel %vm479, %v374, 0
    %v517 = vsel %vm479, %v379, 0
    %v520 = vsel %vm479, %v384, 0
    %v523 = vsel %vm479, %v389, 0
    %v526 = vsel %vm479, %v394, 0
    %v529 = vsel %vm479, %v399, 0
    %v532 = vsel %vm479, %v404, 0
    %v535 = vsel %vm479, %v409, 0
    %v538 = vsel %vm479, %v414, 0
    %v541 = vsel %vm479, %v419, 0
    %v544 = vsel %vm479, %v424, 0
    %v547 = vsel %vm479, %v429, 0
    %v550 = vsel %vm479, %v434, 0
    %v553 = vsel %vm479, %v439, 0
    %v556 = vsel %vm479, %v444, 0
    %v559 = vsel %vm479, %v449, 0
    %v562 = vsel %vm479, %v454, 0
    %v565 = vsel %vm479, %v459, 0
    %v568 = vsel %vm479, %v464, 0
    %v571 = vsel %vm479, %v469, 0
    %v574 = vsel %vm479, %v474, 0
    %576 = vmatprep.subr.mxu0 0.0
    %577 = vmatpush1.msra.mxu0 %v477
    %578 = vmatprep.subr.mxu0 0.0
    %579 = vmatpush1.msra.mxu0 %v478
    %580 = vmatprep.subr.mxu0 0.0
    %581 = vmatpush1.msra.mxu0 0.0
    %582 = vmatprep.subr.mxu0 0.0
    %583 = vmatpush1.msra.mxu0 0.0
    %584 = vmatprep.subr.mxu0 0.0
    %585 = vmatpush1.msra.mxu0 0.0
    %586 = vmatprep.subr.mxu0 0.0
    %587 = vmatpush1.msra.mxu0 0.0
    %588 = vmatprep.subr.mxu0 0.0
    %589 = vmatpush1.msra.mxu0 0.0
    %590 = vmatprep.subr.mxu0 0.0
    %591 = vmatpush1.msra.mxu0 0.0
    %592 = vmatprep.subr.mxu0 0.0
    %593 = vmatpush1.msra.mxu0 0.0
    %594 = vmatprep.subr.mxu0 0.0
    %595 = vmatpush1.msra.mxu0 0.0
    %596 = vmatprep.subr.mxu0 0.0
    %597 = vmatpush1.msra.mxu0 0.0
    %598 = vmatprep.subr.mxu0 0.0
    %599 = vmatpush1.msra.mxu0 0.0
    %600 = vmatprep.subr.mxu0 0.0
    %601 = vmatpush1.msra.mxu0 0.0
    %602 = vmatprep.subr.mxu0 0.0
    %603 = vmatpush1.msra.mxu0 0.0
    %604 = vmatprep.subr.mxu0 0.0
    %605 = vmatpush1.msra.mxu0 0.0
    %606 = vmatprep.subr.mxu0 0.0
    %607 = vmatpush1.msra.mxu0 0.0
    %608 = vmatprep.subr.mxu0 0.0
    %609 = vmatpush1.msra.mxu0 0.0
    %610 = vmatprep.subr.mxu0 0.0
    %611 = vmatpush1.msra.mxu0 0.0
    %612 = vmatprep.subr.mxu0 0.0
    %613 = vmatpush1.msra.mxu0 0.0
    %614 = vmatprep.subr.mxu0 0.0
    %615 = vmatpush1.msra.mxu0 0.0
    %616 = vmatprep.subr.mxu0 0.0
    %617 = vmatpush1.msra.mxu0 0.0
    %618 = vmatprep.subr.mxu0 0.0
    %619 = vmatpush1.msra.mxu0 0.0
    %620 = vmatprep.subr.mxu0 0.0
    %621 = vmatpush1.msra.mxu0 0.0
    %622 = vmatprep.subr.mxu0 0.0
    %623 = vmatpush1.msra.mxu0 0.0
    %624 = vmatprep.subr.mxu0 0.0
    %625 = vmatpush1.msra.mxu0 0.0
    %626 = vmatprep.subr.mxu0 0.0
    %627 = vmatpush1.msra.mxu0 0.0
    %628 = vmatprep.subr.mxu0 0.0
    %629 = vmatpush1.msra.mxu0 0.0
    %630 = vmatprep.subr.mxu0 0.0
    %631 = vmatpush1.msra.mxu0 0.0
    %632 = vmatprep.subr.mxu0 0.0
    %633 = vmatpush1.msra.mxu0 0.0
    %634 = vmatprep.subr.mxu0 0.0
    %635 = vmatpush1.msra.mxu0 0.0
    %636 = vmatprep.subr.mxu0 0.0
    %637 = vmatpush1.msra.mxu0 0.0
    %638 = vmatprep.subr.mxu0 0.0
    %639 = vmatpush1.msra.mxu0 0.0
    %640 = vmatprep.mubr.f32.mxu0 0.0
    %641 = vmatmul.mubr.f32.gmra.mrb[0].mxu0 %v481
    %v642 = vpop.f32.mrb[0].mxu0
    %v643 = vadd.f32 0.0, %v642
    %v644 = vpop.f32.mrb[0].mxu0
    %645 = vmatprep.mubr.f32.mxu0 0.0
    %646 = vmatmul.mubr.f32.gmra.mrb[0].mxu0 %v484
    %v647 = vpop.f32.mrb[0].mxu0
    %v648 = vadd.f32 0.0, %v647
    %v649 = vpop.f32.mrb[0].mxu0
    %650 = vmatprep.mubr.f32.mxu0 0.0
    %651 = vmatmul.mubr.f32.gmra.mrb[0].mxu0 %v487
    %v652 = vpop.f32.mrb[0].mxu0
    %v653 = vadd.f32 0.0, %v652
    %v654 = vpop.f32.mrb[0].mxu0
    %655 = vmatprep.mubr.f32.mxu0 0.0
    %656 = vmatmul.mubr.f32.gmra.mrb[0].mxu0 %v490
    %v657 = vpop.f32.mrb[0].mxu0
    %v658 = vadd.f32 0.0, %v657
    %v659 = vpop.f32.mrb[0].mxu0
    %660 = vmatprep.mubr.f32.mxu0 0.0
    %661 = vmatmul.mubr.f32.gmra.mrb[0].mxu0 %v493
    %v662 = vpop.f32.mrb[0].mxu0
    %v663 = vadd.f32 0.0, %v662
    %v664 = vpop.f32.mrb[0].mxu0
    %665 = vmatprep.mubr.f32.mxu0 0.0
    %666 = vmatmul.mubr.f32.gmra.mrb[0].mxu0 %v496
    %v667 = vpop.f32.mrb[0].mxu0
    %v668 = vadd.f32 0.0, %v667
    %v669 = vpop.f32.mrb[0].mxu0
    %670 = vmatprep.mubr.f32.mxu0 0.0
    %671 = vmatmul.mubr.f32.gmra.mrb[0].mxu0 %v499
    %v672 = vpop.f32.mrb[0].mxu0
    %v673 = vadd.f32 0.0, %v672
    %v674 = vpop.f32.mrb[0].mxu0
    %675 = vmatprep.mubr.f32.mxu0 0.0
    %676 = vmatmul.mubr.f32.gmra.mrb[0].mxu0 %v502
    %v677 = vpop.f32.mrb[0].mxu0
    %v678 = vadd.f32 0.0, %v677
    %v679 = vpop.f32.mrb[0].mxu0
    %680 = vmatprep.mubr.f32.mxu0 0.0
    %681 = vmatmul.mubr.f32.gmra.mrb[0].mxu0 %v505
    %v682 = vpop.f32.mrb[0].mxu0
    %v683 = vadd.f32 0.0, %v682
    %v684 = vpop.f32.mrb[0].mxu0
    %685 = vmatprep.mubr.f32.mxu0 0.0
    %686 = vmatmul.mubr.f32.gmra.mrb[0].mxu0 %v508
    %v687 = vpop.f32.mrb[0].mxu0
    %v688 = vadd.f32 0.0, %v687
    %v689 = vpop.f32.mrb[0].mxu0
    %690 = vmatprep.mubr.f32.mxu0 0.0
    %691 = vmatmul.mubr.f32.gmra.mrb[0].mxu0 %v511
    %v692 = vpop.f32.mrb[0].mxu0
    %v693 = vadd.f32 0.0, %v692
    %v694 = vpop.f32.mrb[0].mxu0
    %695 = vmatprep.mubr.f32.mxu0 0.0
    %696 = vmatmul.mubr.f32.gmra.mrb[0].mxu0 %v514
    %v697 = vpop.f32.mrb[0].mxu0
    %v698 = vadd.f32 0.0, %v697
    %v699 = vpop.f32.mrb[0].mxu0
    %700 = vmatprep.mubr.f32.mxu0 0.0
    %701 = vmatmul.mubr.f32.gmra.mrb[0].mxu0 %v517
    %v702 = vpop.f32.mrb[0].mxu0
    %v703 = vadd.f32 0.0, %v702
    %v704 = vpop.f32.mrb[0].mxu0
    %705 = vmatprep.mubr.f32.mxu0 0.0
    %706 = vmatmul.mubr.f32.gmra.mrb[0].mxu0 %v520
    %v707 = vpop.f32.mrb[0].mxu0
    %v708 = vadd.f32 0.0, %v707
    %v709 = vpop.f32.mrb[0].mxu0
    %710 = vmatprep.mubr.f32.mxu0 0.0
    %711 = vmatmul.mubr.f32.gmra.mrb[0].mxu0 %v523
    %v712 = vpop.f32.mrb[0].mxu0
    %v713 = vadd.f32 0.0, %v712
    %v714 = vpop.f32.mrb[0].mxu0
    %715 = vmatprep.mubr.f32.mxu0 0.0
    %716 = vmatmul.mubr.f32.gmra.mrb[0].mxu0 %v526
    %v717 = vpop.f32.mrb[0].mxu0
    %v718 = vadd.f32 0.0, %v717
    %v719 = vpop.f32.mrb[0].mxu0
    %720 = vmatprep.mubr.f32.mxu0 0.0
    %721 = vmatmul.mubr.f32.gmra.mrb[0].mxu0 %v529
    %v722 = vpop.f32.mrb[0].mxu0
    %v723 = vadd.f32 0.0, %v722
    %v724 = vpop.f32.mrb[0].mxu0
    %725 = vmatprep.mubr.f32.mxu0 0.0
    %726 = vmatmul.mubr.f32.gmra.mrb[0].mxu0 %v532
    %v727 = vpop.f32.mrb[0].mxu0
    %v728 = vadd.f32 0.0, %v727
    %v729 = vpop.f32.mrb[0].mxu0
    %730 = vmatprep.mubr.f32.mxu0 0.0
    %731 = vmatmul.mubr.f32.gmra.mrb[0].mxu0 %v535
    %v732 = vpop.f32.mrb[0].mxu0
    %v733 = vadd.f32 0.0, %v732
    %v734 = vpop.f32.mrb[0].mxu0
    %735 = vmatprep.mubr.f32.mxu0 0.0
    %736 = vmatmul.mubr.f32.gmra.mrb[0].mxu0 %v538
    %v737 = vpop.f32.mrb[0].mxu0
    %v738 = vadd.f32 0.0, %v737
    %v739 = vpop.f32.mrb[0].mxu0
    %740 = vmatprep.mubr.f32.mxu0 0.0
    %741 = vmatmul.mubr.f32.gmra.mrb[0].mxu0 %v541
    %v742 = vpop.f32.mrb[0].mxu0
    %v743 = vadd.f32 0.0, %v742
    %v744 = vpop.f32.mrb[0].mxu0
    %745 = vmatprep.mubr.f32.mxu0 0.0
    %746 = vmatmul.mubr.f32.gmra.mrb[0].mxu0 %v544
    %v747 = vpop.f32.mrb[0].mxu0
    %v748 = vadd.f32 0.0, %v747
    %v749 = vpop.f32.mrb[0].mxu0
    %750 = vmatprep.mubr.f32.mxu0 0.0
    %751 = vmatmul.mubr.f32.gmra.mrb[0].mxu0 %v547
    %v752 = vpop.f32.mrb[0].mxu0
    %v753 = vadd.f32 0.0, %v752
    %v754 = vpop.f32.mrb[0].mxu0
    %755 = vmatprep.mubr.f32.mxu0 0.0
    %756 = vmatmul.mubr.f32.gmra.mrb[0].mxu0 %v550
    %v757 = vpop.f32.mrb[0].mxu0
    %v758 = vadd.f32 0.0, %v757
    %v759 = vpop.f32.mrb[0].mxu0
    %760 = vmatprep.mubr.f32.mxu0 0.0
    %761 = vmatmul.mubr.f32.gmra.mrb[0].mxu0 %v553
    %v762 = vpop.f32.mrb[0].mxu0
    %v763 = vadd.f32 0.0, %v762
    %v764 = vpop.f32.mrb[0].mxu0
    %765 = vmatprep.mubr.f32.mxu0 0.0
    %766 = vmatmul.mubr.f32.gmra.mrb[0].mxu0 %v556
    %v767 = vpop.f32.mrb[0].mxu0
    %v768 = vadd.f32 0.0, %v767
    %v769 = vpop.f32.mrb[0].mxu0
    %770 = vmatprep.mubr.f32.mxu0 0.0
    %771 = vmatmul.mubr.f32.gmra.mrb[0].mxu0 %v559
    %v772 = vpop.f32.mrb[0].mxu0
    %v773 = vadd.f32 0.0, %v772
    %v774 = vpop.f32.mrb[0].mxu0
    %775 = vmatprep.mubr.f32.mxu0 0.0
    %776 = vmatmul.mubr.f32.gmra.mrb[0].mxu0 %v562
    %v777 = vpop.f32.mrb[0].mxu0
    %v778 = vadd.f32 0.0, %v777
    %v779 = vpop.f32.mrb[0].mxu0
    %780 = vmatprep.mubr.f32.mxu0 0.0
    %781 = vmatmul.mubr.f32.gmra.mrb[0].mxu0 %v565
    %v782 = vpop.f32.mrb[0].mxu0
    %v783 = vadd.f32 0.0, %v782
    %v784 = vpop.f32.mrb[0].mxu0
    %785 = vmatprep.mubr.f32.mxu0 0.0
    %786 = vmatmul.mubr.f32.gmra.mrb[0].mxu0 %v568
    %v787 = vpop.f32.mrb[0].mxu0
    %v788 = vadd.f32 0.0, %v787
    %v789 = vpop.f32.mrb[0].mxu0
    %790 = vmatprep.mubr.f32.mxu0 0.0
    %791 = vmatmul.mubr.f32.gmra.mrb[0].mxu0 %v571
    %v792 = vpop.f32.mrb[0].mxu0
    %v793 = vadd.f32 0.0, %v792
    %v794 = vpop.f32.mrb[0].mxu0
    %795 = vmatprep.mubr.f32.mxu0 0.0
    %796 = vmatmul.mubr.f32.gmra.mrb[0].mxu0 %v574
    %v797 = vpop.f32.mrb[0].mxu0
    %v798 = vadd.f32 0.0, %v797
    %v799 = vpop.f32.mrb[0].mxu0
    %800 = vdwg.mxu0
    %vm801 = vcmask 261120
    %802 = vst.msk [vmem:[%s3] sm:$0xff] %vm801, %v643
    %803 = vst.msk [vmem:[%s3 + $0x8] sm:$0xff] %vm801, %v648
    %804 = vst.msk [vmem:[%s3 + $0x10] sm:$0xff] %vm801, %v653
    %805 = vst.msk [vmem:[%s3 + $0x18] sm:$0xff] %vm801, %v658
    %806 = vst.msk [vmem:[%s3 + $0x20] sm:$0xff] %vm801, %v663
    %807 = vst.msk [vmem:[%s3 + $0x28] sm:$0xff] %vm801, %v668
    %808 = vst.msk [vmem:[%s3 + $0x30] sm:$0xff] %vm801, %v673
    %809 = vst.msk [vmem:[%s3 + $0x38] sm:$0xff] %vm801, %v678
    %810 = vst.msk [vmem:[%s3 + $0x40] sm:$0xff] %vm801, %v683
    %811 = vst.msk [vmem:[%s3 + $0x48] sm:$0xff] %vm801, %v688
    %812 = vst.msk [vmem:[%s3 + $0x50] sm:$0xff] %vm801, %v693
    %813 = vst.msk [vmem:[%s3 + $0x58] sm:$0xff] %vm801, %v698
    %814 = vst.msk [vmem:[%s3 + $0x60] sm:$0xff] %vm801, %v703
    %815 = vst.msk [vmem:[%s3 + $0x68] sm:$0xff] %vm801, %v708
    %816 = vst.msk [vmem:[%s3 + $0x70] sm:$0xff] %vm801, %v713
    %817 = vst.msk [vmem:[%s3 + $0x78] sm:$0xff] %vm801, %v718
    %818 = vst.msk [vmem:[%s3 + $0x80] sm:$0xff] %vm801, %v723
    %819 = vst.msk [vmem:[%s3 + $0x88] sm:$0xff] %vm801, %v728
    %820 = vst.msk [vmem:[%s3 + $0x90] sm:$0xff] %vm801, %v733
    %821 = vst.msk [vmem:[%s3 + $0x98] sm:$0xff] %vm801, %v738
    %822 = vst.msk [vmem:[%s3 + $0xa0] sm:$0xff] %vm801, %v743
    %823 = vst.msk [vmem:[%s3 + $0xa8] sm:$0xff] %vm801, %v748
    %824 = vst.msk [vmem:[%s3 + $0xb0] sm:$0xff] %vm801, %v753
    %825 = vst.msk [vmem:[%s3 + $0xb8] sm:$0xff] %vm801, %v758
    %826 = vst.msk [vmem:[%s3 + $0xc0] sm:$0xff] %vm801, %v763
    %827 = vst.msk [vmem:[%s3 + $0xc8] sm:$0xff] %vm801, %v768
    %828 = vst.msk [vmem:[%s3 + $0xd0] sm:$0xff] %vm801, %v773
    %829 = vst.msk [vmem:[%s3 + $0xd8] sm:$0xff] %vm801, %v778
    %830 = vst.msk [vmem:[%s3 + $0xe0] sm:$0xff] %vm801, %v783
    %831 = vst.msk [vmem:[%s3 + $0xe8] sm:$0xff] %vm801, %v788
    %832 = vst.msk [vmem:[%s3 + $0xf0] sm:$0xff] %vm801, %v793
    %833 = vst.msk [vmem:[%s3 + $0xf8] sm:$0xff] %vm801, %v798
    // Predicated region
    $region18: #{tpu_custom_call.1} parent=1 // pred_check
      _
    $region19: #{tpu_custom_call.1} parent=1 // pred_check_branch
      %835 = sbr.rel (0) target = $region21
    $region20: #{tpu_custom_call.1} parent=1 // pred_region
      _
    $region21: #{tpu_custom_call.1} parent=1 // pred_fallthru
      _
    // Predicated region
    $region22: #{tpu_custom_call.1} parent=1 // pred_check
      _
    $region23: #{tpu_custom_call.1} parent=1 // pred_check_branch
      %837 = sbr.rel (0) target = $region25
    $region24: #{tpu_custom_call.1} parent=1 // pred_region
      _
    $region25: #{tpu_custom_call.1} parent=1 // pred_fallthru
      _
    %838 = vsyncpa [#allocation3], 1

</llo_original>
